<compile_context>
chip_gen: v7x
topology: tpu7x:2x2x1
jax: 0.10.0
libtpu: 0.0.40
codegen_flags: <defaults>
</compile_context>

<pallas_src>
from functools import partial

import jax
import jax.numpy as jnp
from jax.experimental import pallas as pl
from jax.experimental.pallas import tpu as pltpu


def _round_up(v, m):
    return (v + m - 1) // m * m


def res_block_kernel(xs_ref, xr_ref, a_ref, b1_ref, b2w_ref, b2b_ref, mask_ref,
                     out_ref, h1_scr):
    # xs_ref  : (1, Rt, K)    bf16 stacked padded-input rows; row (1 + b*(H+2) + j) holds
    #                         image b's h-padded row j flattened as c*(W+2)+(w+1), lane-pad K
    # xr_ref  : (1, M, 128)   f32 residual slab (x rows, c*W+w, + conv2 bias pre-tiled? no:
    #                         plain x rows), row-aligned with the output slab
    # a_ref   : (3, K, KM)    bf16 conv1 banded weights, one (K, KM) matrix per vertical tap
    # b1_ref  : (1, KM)       f32 conv1 bias tiled per intermediate lane (o*W + w)
    # b2w_ref : (3, KM, 128)  bf16 conv2 banded weights per vertical tap, output lanes padded
    # b2b_ref : (1, 128)      f32 conv2 bias tiled per output lane (c*W + w), zero pad lanes
    # mask_ref: (M, 1)        f32 {0,1} mask zeroing the per-image vertical-pad rows
    # out_ref : (1, M, 128)   output slab; valid rows are r in [0, H) of each (H+2) block
    # h1_scr  : (Rt, KM)      bf16 scratch for the vertically-padded ReLU intermediate
    M = out_ref.shape[1]                       # B*(H+2) stacked rows per grid step
    f32 = jnp.float32

    # ---- conv1: three accumulating MXU dots on Ref-view row windows (no register
    # sublane shuffles); bf16 operands, f32 accumulation. ------------------------------
    pre = jnp.dot(xs_ref[0, 0:M, :], a_ref[0], preferred_element_type=f32)
    pre = pre + jnp.dot(xs_ref[0, 1:M + 1, :], a_ref[1], preferred_element_type=f32)
    pre = pre + jnp.dot(xs_ref[0, 2:M + 2, :], a_ref[2], preferred_element_type=f32)

    # Bias + ReLU in f32, zero the vertical-pad rows with the precomputed mask, store the
    # intermediate as bf16 so conv2 can re-read shifted Ref views of it.
    h1 = jnp.maximum(pre + b1_ref[...], 0.0) * mask_ref[...]
    h1_scr[0:M, :] = h1.astype(h1_scr.dtype)
    tail = h1_scr.shape[0] - M                 # >= 2 rows read by (discarded) junk outputs
    h1_scr[M:, :] = jnp.zeros((tail, h1_scr.shape[1]), h1_scr.dtype)

    # ---- conv2: three accumulating MXU dots; horizontal zero-pad lives in the band. ---
    z = jnp.dot(h1_scr[0:M, :], b2w_ref[0], preferred_element_type=f32)
    z = z + jnp.dot(h1_scr[1:M + 1, :], b2w_ref[1], preferred_element_type=f32)
    z = z + jnp.dot(h1_scr[2:M + 2, :], b2w_ref[2], preferred_element_type=f32)

    # conv2 bias + residual x as f32 VPU adds; lane-dense (128-wide) store.
    out_ref[0] = (z + b2b_ref[...] + xr_ref[0]).astype(out_ref.dtype)


def _build_banded_weights(w1, b1, w2, b2, W, C, Cm, K, KM, LO):
    """Fold the 3 horizontal taps, the channel contraction and the horizontal zero
    padding into per-vertical-tap banded matrices (built once, outside the kernel)."""
    f32 = jnp.float32
    Wp2 = W + 2
    dxs = jnp.arange(3)
    wo = jnp.arange(W)
    wp = jnp.arange(Wp2)

    # conv1 band: A[dy, c*(W+2)+k, o*W+w] = w1[dy, k-w, c, o]
    ind1 = (wp[None, :, None] == wo[None, None, :] + dxs[:, None, None]).astype(f32)   # (3,Wp2,W)
    A = jnp.einsum("xpw,yxco->ycpow", ind1, w1.astype(f32))            # (3, C, Wp2, Cm, W)
    A = A.reshape(3, C * Wp2, Cm * W)
    A = jnp.pad(A, ((0, 0), (0, K - C * Wp2), (0, KM - Cm * W))).astype(jnp.bfloat16)

    # conv2 band: B2[dy, o*W+wv, co*W+w] = w2[dy, wv-w+1, o, co]; out-of-range taps absent
    # (implements the horizontal zero padding of the intermediate).
    wv = jnp.arange(W)
    ind2 = (wv[None, :, None] == wo[None, None, :] + dxs[:, None, None] - 1).astype(f32)  # (3,W,W)
    B2 = jnp.einsum("xiw,yxoc->yoicw", ind2, w2.astype(f32)).reshape(3, Cm * W, C * W)
    B2 = jnp.pad(B2, ((0, 0), (0, KM - Cm * W), (0, LO - C * W))).astype(jnp.bfloat16)

    b1row = jnp.pad(jnp.repeat(b1.reshape(-1).astype(f32), W), (0, KM - Cm * W)).reshape(1, KM)
    b2row = jnp.pad(jnp.repeat(b2.reshape(-1).astype(f32), W), (0, LO - C * W)).reshape(1, LO)
    return A, b1row, B2, b2row


@partial(jax.jit, static_argnames=("images_per_step",))
def res_sequential(x_nchw, w1, b1, w2, b2, images_per_step=None):
    """y = x + conv2(relu(conv1(x))), x in NCHW (PyTorch convention)."""
    N, C, H, W = x_nchw.shape
    Cm = w1.shape[3]
    # >= 2 "parallel" grid steps keeps both v7x TensorCores busy; each step stacks
    # B images along the MXU M dimension (on single-TC v6e/v5e, raise B to fuse more).
    B = images_per_step if images_per_step is not None else max(1, N // 2)
    assert N % B == 0
    G = N // B
    M = B * (H + 2)                      # stacked intermediate/output rows per step
    Wp2 = W + 2
    K = _round_up(C * Wp2, 128)          # conv1 contraction lanes (lane-dense)
    KM = _round_up(Cm * W, 128)          # intermediate lanes
    LO = _round_up(C * W, 128)           # output lanes (padded to 128 -> unmasked stores)
    Rt = _round_up(M + 2, 8)             # stacked input / scratch rows (8-aligned)

    f32 = jnp.float32
    # Layout plumbing (plain JAX): padded input rows, images stacked per step with shared
    # single-row zero separators so every vertical tap is one contiguous row window.
    xt = jnp.transpose(x_nchw, (0, 2, 1, 3)).astype(f32)          # (N, H, C, W)
    xp = jnp.pad(xt, ((0, 0), (1, 1), (0, 0), (1, 1)))            # (N, H+2, C, W+2)
    xp = jnp.pad(xp.reshape(N, H + 2, C * Wp2), ((0, 0), (0, 0), (0, K - C * Wp2)))
    xs = xp.reshape(G, M, K)
    xs = jnp.pad(xs, ((0, 0), (1, Rt - M - 1), (0, 0))).astype(jnp.bfloat16)   # (G, Rt, K)

    # Residual slab in f32, row-aligned with the output slab (rows r >= H are junk/zero).
    xr = jnp.pad(xt.reshape(N, H, C * W), ((0, 0), (0, 2), (0, LO - C * W)))   # (N, H+2, LO)
    xr = xr.reshape(G, M, LO)

    A, b1row, B2, b2row = _build_banded_weights(w1, b1, w2, b2, W, C, Cm, K, KM, LO)

    # Precomputed vertical-border mask of the padded intermediate (1 on real rows).
    r = jnp.arange(H + 2)
    mask = jnp.tile(((r >= 1) & (r <= H)).astype(f32), B).reshape(M, 1)

    out_rows = pl.pallas_call(
        res_block_kernel,
        out_shape=jax.ShapeDtypeStruct((G, M, LO), x_nchw.dtype),
        grid=(G,),
        in_specs=[
            pl.BlockSpec((1, Rt, K), lambda g: (g, 0, 0)),        # stacked padded input
            pl.BlockSpec((1, M, LO), lambda g: (g, 0, 0)),        # residual slab (f32)
            pl.BlockSpec((3, K, KM), lambda g: (0, 0, 0)),        # conv1 bands (bf16)
            pl.BlockSpec((1, KM), lambda g: (0, 0)),              # conv1 bias row
            pl.BlockSpec((3, KM, LO), lambda g: (0, 0, 0)),       # conv2 bands (bf16)
            pl.BlockSpec((1, LO), lambda g: (0, 0)),              # conv2 bias row
            pl.BlockSpec((M, 1), lambda g: (0, 0)),               # border mask
        ],
        out_specs=pl.BlockSpec((1, M, LO), lambda g: (g, 0, 0)),
        scratch_shapes=[pltpu.VMEM((Rt, KM), jnp.bfloat16)],      # padded intermediate
        compiler_params=pltpu.CompilerParams(
            dimension_semantics=("parallel",),
            vmem_limit_bytes=32 * 1024 * 1024,
        ),
    )(xs, xr, A, b1row, B2, b2row, mask)

    # (G, B*(H+2), 128) -> drop junk rows and pad lanes -> NCHW.
    # (At real sizes this transpose would be folded into the kernel's output layout.)
    out = out_rows.reshape(G, B, H + 2, LO)[:, :, :H, :C * W]
    return jnp.transpose(out.reshape(N, H, C, W), (0, 2, 1, 3))


def ref_forward(x, w1, b1, w2, b2):
    """Pure-JAX reference of the same ResSequential block (NCHW)."""
    y = jax.lax.conv_general_dilated(x, w1, (1, 1), "SAME",
                                     dimension_numbers=("NCHW", "HWIO", "NCHW"))
    y = jnp.maximum(y + b1.reshape(1, -1, 1, 1), 0.0)
    y = jax.lax.conv_general_dilated(y, w2, (1, 1), "SAME",
                                     dimension_numbers=("NCHW", "HWIO", "NCHW"))
    y = y + b2.reshape(1, -1, 1, 1)
    return x + y


if __name__ == "__main__":
    def run_case(N, C, H, W, Cm, images_per_step):
        key = jax.random.PRNGKey(0)
        kx, k1, k2, k3, k4 = jax.random.split(key, 5)
        x = jax.random.normal(kx, (N, C, H, W), jnp.float32)
        w1 = 0.1 * jax.random.normal(k1, (3, 3, C, Cm), jnp.float32)   # HWIO
        b1 = 0.1 * jax.random.normal(k2, (Cm,), jnp.float32)
        w2 = 0.1 * jax.random.normal(k3, (3, 3, Cm, C), jnp.float32)
        b2 = 0.1 * jax.random.normal(k4, (C,), jnp.float32)

        out = jax.block_until_ready(
            res_sequential(x, w1, b1, w2, b2, images_per_step=images_per_step))
        ref = jax.block_until_ready(ref_forward(x, w1, b1, w2, b2))

        assert out.shape == (N, C, H, W)
        err = float(jnp.max(jnp.abs(out - ref)))
        # bf16 MXU operands with f32 accumulation -> loosened tolerance.
        assert jnp.allclose(out, ref, atol=5e-2, rtol=5e-2), err

    # Demo shape implied by the module: 2 images, 4 channels, 16x16, mid channels 8.
    run_case(2, 4, 16, 16, 8, images_per_step=1)   # 2 parallel steps (one per v7x TC)
    run_case(8, 4, 16, 16, 8, images_per_step=4)   # M-stacked path: 72 rows per MXU dot
    print("KERNEL_OK")
</pallas_src>

<mosaic_0001>
module attributes {stable_mosaic.version = 11 : i64} {
  func.func @res_block_kernel(%arg0: i32, %arg1: memref<1x24x128xbf16, #tpu.memory_space<vmem>>, %arg2: memref<1x18x128xf32, #tpu.memory_space<vmem>>, %arg3: memref<3x128x128xbf16, #tpu.memory_space<vmem>>, %arg4: memref<1x128xf32, #tpu.memory_space<vmem>>, %arg5: memref<3x128x128xbf16, #tpu.memory_space<vmem>>, %arg6: memref<1x128xf32, #tpu.memory_space<vmem>>, %arg7: memref<18x1xf32, #tpu.memory_space<vmem>>, %arg8: memref<1x18x128xf32, #tpu.memory_space<vmem>>, %arg9: memref<24x128xbf16, #tpu.memory_space<vmem>>) attributes {dimension_semantics = [#tpu.dimension_semantics<parallel>], iteration_bounds = array<i64: 2>, scalar_prefetch = 0 : i64, scratch_operands = 1 : i64, tpu.core_type = #tpu.core_type<tc>, window_params = [{transform_indices = @transform_0, window_bounds = array<i64: 1, 24, 128>}, {transform_indices = @transform_1, window_bounds = array<i64: 1, 18, 128>}, {pipeline_mode = #tpu.pipeline_mode<synchronous>, transform_indices = @transform_2, window_bounds = array<i64: 3, 128, 128>}, {pipeline_mode = #tpu.pipeline_mode<synchronous>, transform_indices = @transform_3, window_bounds = array<i64: 1, 128>}, {pipeline_mode = #tpu.pipeline_mode<synchronous>, transform_indices = @transform_4, window_bounds = array<i64: 3, 128, 128>}, {pipeline_mode = #tpu.pipeline_mode<synchronous>, transform_indices = @transform_5, window_bounds = array<i64: 1, 128>}, {pipeline_mode = #tpu.pipeline_mode<synchronous>, transform_indices = @transform_6, window_bounds = array<i64: 18, 1>}, {transform_indices = @transform_7, window_bounds = array<i64: 1, 18, 128>}]} {
    %c0 = arith.constant 0 : index
    %c0_0 = arith.constant 0 : index
    %c0_1 = arith.constant 0 : index
    %0 = vector.load %arg1[%c0, %c0_0, %c0_1] : memref<1x24x128xbf16, #tpu.memory_space<vmem>>, vector<1x18x128xbf16>
    %1 = vector.shape_cast %0 : vector<1x18x128xbf16> to vector<18x128xbf16>
    %c0_2 = arith.constant 0 : index
    %c0_3 = arith.constant 0 : index
    %c0_4 = arith.constant 0 : index
    %2 = vector.load %arg3[%c0_2, %c0_3, %c0_4] : memref<3x128x128xbf16, #tpu.memory_space<vmem>>, vector<1x128x128xbf16>
    %3 = vector.shape_cast %2 : vector<1x128x128xbf16> to vector<128x128xbf16>
    %cst = arith.constant dense<0.000000e+00> : vector<18x128xf32>
    %4 = tpu.matmul %1, %3, %cst {dimension_numbers = #tpu.dot_dimension_numbers<[1], [0], [0], [1], [0, 0, 1, 1], [], []>} : vector<18x128xbf16>, vector<128x128xbf16>, vector<18x128xf32> -> vector<18x128xf32>
    %c0_5 = arith.constant 0 : index
    %c1 = arith.constant 1 : index
    %c0_6 = arith.constant 0 : index
    %5 = vector.load %arg1[%c0_5, %c1, %c0_6] : memref<1x24x128xbf16, #tpu.memory_space<vmem>>, vector<1x18x128xbf16>
    %6 = vector.shape_cast %5 : vector<1x18x128xbf16> to vector<18x128xbf16>
    %c1_7 = arith.constant 1 : index
    %c0_8 = arith.constant 0 : index
    %c0_9 = arith.constant 0 : index
    %7 = vector.load %arg3[%c1_7, %c0_8, %c0_9] : memref<3x128x128xbf16, #tpu.memory_space<vmem>>, vector<1x128x128xbf16>
    %8 = vector.shape_cast %7 : vector<1x128x128xbf16> to vector<128x128xbf16>
    %cst_10 = arith.constant dense<0.000000e+00> : vector<18x128xf32>
    %9 = tpu.matmul %6, %8, %cst_10 {dimension_numbers = #tpu.dot_dimension_numbers<[1], [0], [0], [1], [0, 0, 1, 1], [], []>} : vector<18x128xbf16>, vector<128x128xbf16>, vector<18x128xf32> -> vector<18x128xf32>
    %10 = arith.addf %4, %9 : vector<18x128xf32>
    %c0_11 = arith.constant 0 : index
    %c2 = arith.constant 2 : index
    %c0_12 = arith.constant 0 : index
    %11 = vector.load %arg1[%c0_11, %c2, %c0_12] : memref<1x24x128xbf16, #tpu.memory_space<vmem>>, vector<1x18x128xbf16>
    %12 = vector.shape_cast %11 : vector<1x18x128xbf16> to vector<18x128xbf16>
    %c2_13 = arith.constant 2 : index
    %c0_14 = arith.constant 0 : index
    %c0_15 = arith.constant 0 : index
    %13 = vector.load %arg3[%c2_13, %c0_14, %c0_15] : memref<3x128x128xbf16, #tpu.memory_space<vmem>>, vector<1x128x128xbf16>
    %14 = vector.shape_cast %13 : vector<1x128x128xbf16> to vector<128x128xbf16>
    %cst_16 = arith.constant dense<0.000000e+00> : vector<18x128xf32>
    %15 = tpu.matmul %12, %14, %cst_16 {dimension_numbers = #tpu.dot_dimension_numbers<[1], [0], [0], [1], [0, 0, 1, 1], [], []>} : vector<18x128xbf16>, vector<128x128xbf16>, vector<18x128xf32> -> vector<18x128xf32>
    %16 = arith.addf %10, %15 : vector<18x128xf32>
    %c0_17 = arith.constant 0 : index
    %c0_18 = arith.constant 0 : index
    %17 = vector.load %arg4[%c0_17, %c0_18] : memref<1x128xf32, #tpu.memory_space<vmem>>, vector<1x128xf32>
    %18 = vector.broadcast %17 : vector<1x128xf32> to vector<18x128xf32>
    %19 = arith.addf %16, %18 : vector<18x128xf32>
    %cst_19 = arith.constant 0.000000e+00 : f32
    %20 = vector.broadcast %cst_19 : f32 to vector<18x128xf32>
    %21 = arith.maximumf %19, %20 : vector<18x128xf32>
    %c0_20 = arith.constant 0 : index
    %c0_21 = arith.constant 0 : index
    %22 = vector.load %arg7[%c0_20, %c0_21] : memref<18x1xf32, #tpu.memory_space<vmem>>, vector<18x1xf32>
    %23 = vector.broadcast %22 : vector<18x1xf32> to vector<18x128xf32>
    %24 = arith.mulf %21, %23 : vector<18x128xf32>
    %25 = arith.truncf %24 : vector<18x128xf32> to vector<18x128xbf16>
    %c0_22 = arith.constant 0 : index
    %c0_23 = arith.constant 0 : index
    %26 = vector.load %arg9[%c0_22, %c0_23] : memref<24x128xbf16, #tpu.memory_space<vmem>>, vector<18x128xbf16>
    tpu.vector_store %arg9[%c0_22, %c0_23], %25 {strides = array<i32>} : memref<24x128xbf16, #tpu.memory_space<vmem>>, vector<18x128xbf16>,
    %cst_24 = arith.constant 0.000000e+00 : bf16
    %27 = vector.broadcast %cst_24 : bf16 to vector<6x128xbf16>
    %c18 = arith.constant 18 : index
    %c0_25 = arith.constant 0 : index
    %28 = vector.load %arg9[%c18, %c0_25] : memref<24x128xbf16, #tpu.memory_space<vmem>>, vector<6x128xbf16>
    tpu.vector_store %arg9[%c18, %c0_25], %27 {strides = array<i32>} : memref<24x128xbf16, #tpu.memory_space<vmem>>, vector<6x128xbf16>,
    %c0_26 = arith.constant 0 : index
    %c0_27 = arith.constant 0 : index
    %29 = vector.load %arg9[%c0_26, %c0_27] : memref<24x128xbf16, #tpu.memory_space<vmem>>, vector<18x128xbf16>
    %c0_28 = arith.constant 0 : index
    %c0_29 = arith.constant 0 : index
    %c0_30 = arith.constant 0 : index
    %30 = vector.load %arg5[%c0_28, %c0_29, %c0_30] : memref<3x128x128xbf16, #tpu.memory_space<vmem>>, vector<1x128x128xbf16>
    %31 = vector.shape_cast %30 : vector<1x128x128xbf16> to vector<128x128xbf16>
    %cst_31 = arith.constant dense<0.000000e+00> : vector<18x128xf32>
    %32 = tpu.matmul %29, %31, %cst_31 {dimension_numbers = #tpu.dot_dimension_numbers<[1], [0], [0], [1], [0, 0, 1, 1], [], []>} : vector<18x128xbf16>, vector<128x128xbf16>, vector<18x128xf32> -> vector<18x128xf32>
    %c1_32 = arith.constant 1 : index
    %c0_33 = arith.constant 0 : index
    %33 = vector.load %arg9[%c1_32, %c0_33] : memref<24x128xbf16, #tpu.memory_space<vmem>>, vector<18x128xbf16>
    %c1_34 = arith.constant 1 : index
    %c0_35 = arith.constant 0 : index
    %c0_36 = arith.constant 0 : index
    %34 = vector.load %arg5[%c1_34, %c0_35, %c0_36] : memref<3x128x128xbf16, #tpu.memory_space<vmem>>, vector<1x128x128xbf16>
    %35 = vector.shape_cast %34 : vector<1x128x128xbf16> to vector<128x128xbf16>
    %cst_37 = arith.constant dense<0.000000e+00> : vector<18x128xf32>
    %36 = tpu.matmul %33, %35, %cst_37 {dimension_numbers = #tpu.dot_dimension_numbers<[1], [0], [0], [1], [0, 0, 1, 1], [], []>} : vector<18x128xbf16>, vector<128x128xbf16>, vector<18x128xf32> -> vector<18x128xf32>
    %37 = arith.addf %32, %36 : vector<18x128xf32>
    %c2_38 = arith.constant 2 : index
    %c0_39 = arith.constant 0 : index
    %38 = vector.load %arg9[%c2_38, %c0_39] : memref<24x128xbf16, #tpu.memory_space<vmem>>, vector<18x128xbf16>
    %c2_40 = arith.constant 2 : index
    %c0_41 = arith.constant 0 : index
    %c0_42 = arith.constant 0 : index
    %39 = vector.load %arg5[%c2_40, %c0_41, %c0_42] : memref<3x128x128xbf16, #tpu.memory_space<vmem>>, vector<1x128x128xbf16>
    %40 = vector.shape_cast %39 : vector<1x128x128xbf16> to vector<128x128xbf16>
    %cst_43 = arith.constant dense<0.000000e+00> : vector<18x128xf32>
    %41 = tpu.matmul %38, %40, %cst_43 {dimension_numbers = #tpu.dot_dimension_numbers<[1], [0], [0], [1], [0, 0, 1, 1], [], []>} : vector<18x128xbf16>, vector<128x128xbf16>, vector<18x128xf32> -> vector<18x128xf32>
    %42 = arith.addf %37, %41 : vector<18x128xf32>
    %c0_44 = arith.constant 0 : index
    %c0_45 = arith.constant 0 : index
    %43 = vector.load %arg6[%c0_44, %c0_45] : memref<1x128xf32, #tpu.memory_space<vmem>>, vector<1x128xf32>
    %44 = vector.broadcast %43 : vector<1x128xf32> to vector<18x128xf32>
    %45 = arith.addf %42, %44 : vector<18x128xf32>
    %c0_46 = arith.constant 0 : index
    %c0_47 = arith.constant 0 : index
    %c0_48 = arith.constant 0 : index
    %46 = vector.load %arg2[%c0_46, %c0_47, %c0_48] : memref<1x18x128xf32, #tpu.memory_space<vmem>>, vector<1x18x128xf32>
    %47 = vector.shape_cast %46 : vector<1x18x128xf32> to vector<18x128xf32>
    %48 = arith.addf %45, %47 : vector<18x128xf32>
    %c0_49 = arith.constant 0 : index
    %c0_50 = arith.constant 0 : index
    %c0_51 = arith.constant 0 : index
    %49 = vector.load %arg8[%c0_49, %c0_50, %c0_51] : memref<1x18x128xf32, #tpu.memory_space<vmem>>, vector<1x18x128xf32>
    %50 = vector.shape_cast %49 : vector<1x18x128xf32> to vector<18x128xf32>
    %51 = vector.shape_cast %48 : vector<18x128xf32> to vector<1x18x128xf32>
    tpu.vector_store %arg8[%c0_49, %c0_50, %c0_51], %51 {strides = array<i32>} : memref<1x18x128xf32, #tpu.memory_space<vmem>>, vector<1x18x128xf32>,
    return
  }
  func.func @transform_0(%arg0: i32) -> (i32, i32, i32) {
    %c0_i32 = arith.constant 0 : i32
    %c0_i32_0 = arith.constant 0 : i32
    %c0_i32_1 = arith.constant 0 : i32
    return %arg0, %c0_i32, %c0_i32_0 : i32, i32, i32
  }
  func.func @transform_1(%arg0: i32) -> (i32, i32, i32) {
    %c0_i32 = arith.constant 0 : i32
    %c0_i32_0 = arith.constant 0 : i32
    %c0_i32_1 = arith.constant 0 : i32
    return %arg0, %c0_i32, %c0_i32_0 : i32, i32, i32
  }
  func.func @transform_2(%arg0: i32) -> (i32, i32, i32) {
    %c0_i32 = arith.constant 0 : i32
    %c0_i32_0 = arith.constant 0 : i32
    %c0_i32_1 = arith.constant 0 : i32
    %c0_i32_2 = arith.constant 0 : i32
    return %c0_i32, %c0_i32_0, %c0_i32_1 : i32, i32, i32
  }
  func.func @transform_3(%arg0: i32) -> (i32, i32) {
    %c0_i32 = arith.constant 0 : i32
    %c0_i32_0 = arith.constant 0 : i32
    %c0_i32_1 = arith.constant 0 : i32
    return %c0_i32, %c0_i32_0 : i32, i32
  }
  func.func @transform_4(%arg0: i32) -> (i32, i32, i32) {
    %c0_i32 = arith.constant 0 : i32
    %c0_i32_0 = arith.constant 0 : i32
    %c0_i32_1 = arith.constant 0 : i32
    %c0_i32_2 = arith.constant 0 : i32
    return %c0_i32, %c0_i32_0, %c0_i32_1 : i32, i32, i32
  }
  func.func @transform_5(%arg0: i32) -> (i32, i32) {
    %c0_i32 = arith.constant 0 : i32
    %c0_i32_0 = arith.constant 0 : i32
    %c0_i32_1 = arith.constant 0 : i32
    return %c0_i32, %c0_i32_0 : i32, i32
  }
  func.func @transform_6(%arg0: i32) -> (i32, i32) {
    %c0_i32 = arith.constant 0 : i32
    %c0_i32_0 = arith.constant 0 : i32
    %c0_i32_1 = arith.constant 0 : i32
    return %c0_i32, %c0_i32_0 : i32, i32
  }
  func.func @transform_7(%arg0: i32) -> (i32, i32, i32) {
    %c0_i32 = arith.constant 0 : i32
    %c0_i32_0 = arith.constant 0 : i32
    %c0_i32_1 = arith.constant 0 : i32
    return %arg0, %c0_i32, %c0_i32_0 : i32, i32, i32
  }
}

</mosaic_0001>

<llo_original>
// kernel: res_sequential.1
$region0: #{res_sequential.1}
  #allocation0 [shape = 'u32[]', space=smem, size = 0x4, offset = 0x4, fixed_abs, tag = 'smem constant byte address 0x4 - core index']
  #allocation1 [shape = 'u32[144,128]{1,0:T(1,128)}', space=vmem, size = 0x12000, scoped, tag = 'internal scratch']
  #allocation2 [shape = 'bf16[24,128]{1,0:T(8,128)(2,1)}', space=vmem, size = 0x1800, scoped, tag = 'scratch operand']
  %s0 = inlined_call_operand.vmem [shape: bf16[2,24,128], index: 0, kind: input, shape index: {}]
  %s1 = inlined_call_operand.vmem [shape: f32[2,18,128], index: 1, kind: input, shape index: {}]
  %s2 = inlined_call_operand.vmem [shape: bf16[3,128,128], index: 2, kind: input, shape index: {}]
  %s3 = inlined_call_operand.vmem [shape: f32[1,128], index: 3, kind: input, shape index: {}]
  %s4 = inlined_call_operand.vmem [shape: bf16[3,128,128], index: 4, kind: input, shape index: {}]
  %s5 = inlined_call_operand.vmem [shape: f32[1,128], index: 5, kind: input, shape index: {}]
  %s6 = inlined_call_operand.vmem [shape: f32[18,1], index: 6, kind: input, shape index: {}]
  %s7 = inlined_call_operand.vmem [shape: f32[2,18,128], index: 7, kind: output, shape index: {}]
  %s8 = sld [smem:[#allocation0]]
  $region61: #{res_sequential.1} parent=0
    _
  %s10 = ssub.s32 1, %s8
  %s11 = scalar_select 0, %s10, %s8
  loop: start=0, step=1, limit=4
  $region2: #{res_sequential.1} parent=0 // loop_pre_header
    _
  $region3: #{res_sequential.1} parent=0 // loop_header
    %s13 = sphi 0, %s17
    %p14 = scmp.ge.s32.totalorder %s13, 4
    %s23 = sphi 0, %s25
    %s26 = sphi 0, %s23
    %s27 = sphi 0, %s26
    %s43 = sphi 0, %s27
    %s49 = sphi 0, %s51
    %s52 = sphi 0, %s49
    %s53 = sphi 0, %s52
    %s69 = sphi 0, %s53
    %s73 = sphi 0, %s73
    %s75 = sphi 0, %s73
    %s76 = sphi 0, %s75
    %s90 = sphi 0, %s76
    %s94 = sphi 0, %s94
    %s96 = sphi 0, %s94
    %s97 = sphi 0, %s96
    %s111 = sphi 0, %s97
    %s115 = sphi 0, %s115
    %s117 = sphi 0, %s115
    %s118 = sphi 0, %s117
    %s132 = sphi 0, %s118
    %s136 = sphi 0, %s136
    %s138 = sphi 0, %s136
    %s139 = sphi 0, %s138
    %s153 = sphi 0, %s139
    %s157 = sphi 0, %s157
    %s159 = sphi 0, %s157
    %s160 = sphi 0, %s159
    %s174 = sphi 0, %s160
    %s180 = sphi 0, %s182
    %s183 = sphi 0, %s180
    %s184 = sphi 0, %s183
    %s200 = sphi 0, %s184
  $region4: #{res_sequential.1} parent=0 // loop_header_branch
    %16 = sbr.rel (%p14) target = $region8
  $region5: #{res_sequential.1} parent=0 // loop_body
    %s18 = ssub.s32 %s13, 1
    %s19 = ssub.s32 %s13, 2
    %s20 = sadd.s32 %s13, 1
    %s21 = ssub.s32 %s13, %s20
    %p22 = scmp.eq.s32.totalorder %s21, 0
    %s24 = sadd.s32 %s23, 1
    %s25 = scalar_select %p22, %s23, %s24
    %p28 = pneg %p22
    %p29 = scmp.eq.s32.totalorder %s13, 1
    %p30 = por %p28, %p29
    %p31 = scmp.ne.s32.totalorder %s23, %s26
    %p32 = scmp.eq.s32.totalorder %s13, 0
    %p33 = por %p31, %p32
    %p34 = scmp.ne.s32.totalorder %s23, %s26
    %p35 = scmp.eq.s32.totalorder %s18, 1
    %p36 = por %p34, %p35
    %p37 = scmp.ne.s32.totalorder %s26, %s27
    %p38 = scmp.eq.s32.totalorder %s18, 0
    %p39 = por %p37, %p38
    %p40 = scmp.ne.s32.totalorder %s26, %s27
    %p41 = scmp.eq.s32.totalorder %s19, 1
    %p42 = por %p40, %p41
    %p44 = scmp.ne.s32.totalorder %s27, %s43
    %p45 = scmp.eq.s32.totalorder %s19, 0
    %p46 = por %p44, %p45
    %s47 = ssub.s32 %s13, %s20
    %p48 = scmp.eq.s32.totalorder %s47, 0
    %s50 = sadd.s32 %s49, 1
    %s51 = scalar_select %p48, %s49, %s50
    %p54 = pneg %p48
    %p55 = scmp.eq.s32.totalorder %s13, 1
    %p56 = por %p54, %p55
    %p57 = scmp.ne.s32.totalorder %s49, %s52
    %p58 = scmp.eq.s32.totalorder %s13, 0
    %p59 = por %p57, %p58
    %p60 = scmp.ne.s32.totalorder %s49, %s52
    %p61 = scmp.eq.s32.totalorder %s18, 1
    %p62 = por %p60, %p61
    %p63 = scmp.ne.s32.totalorder %s52, %s53
    %p64 = scmp.eq.s32.totalorder %s18, 0
    %p65 = por %p63, %p64
    %p66 = scmp.ne.s32.totalorder %s52, %s53
    %p67 = scmp.eq.s32.totalorder %s19, 1
    %p68 = por %p66, %p67
    %p70 = scmp.ne.s32.totalorder %s53, %s69
    %p71 = scmp.eq.s32.totalorder %s19, 0
    %p72 = por %p70, %p71
    %s74 = sadd.s32 %s73, 1
    %p77 = scmp.eq.s32.totalorder %s13, 1
    %p78 = scmp.ne.s32.totalorder %s73, %s75
    %p79 = scmp.eq.s32.totalorder %s13, 0
    %p80 = por %p78, %p79
    %p81 = scmp.ne.s32.totalorder %s73, %s75
    %p82 = scmp.eq.s32.totalorder %s18, 1
    %p83 = por %p81, %p82
    %p84 = scmp.ne.s32.totalorder %s75, %s76
    %p85 = scmp.eq.s32.totalorder %s18, 0
    %p86 = por %p84, %p85
    %p87 = scmp.ne.s32.totalorder %s75, %s76
    %p88 = scmp.eq.s32.totalorder %s19, 1
    %p89 = por %p87, %p88
    %p91 = scmp.ne.s32.totalorder %s76, %s90
    %p92 = scmp.eq.s32.totalorder %s19, 0
    %p93 = por %p91, %p92
    %s95 = sadd.s32 %s94, 1
    %p98 = scmp.eq.s32.totalorder %s13, 1
    %p99 = scmp.ne.s32.totalorder %s94, %s96
    %p100 = scmp.eq.s32.totalorder %s13, 0
    %p101 = por %p99, %p100
    %p102 = scmp.ne.s32.totalorder %s94, %s96
    %p103 = scmp.eq.s32.totalorder %s18, 1
    %p104 = por %p102, %p103
    %p105 = scmp.ne.s32.totalorder %s96, %s97
    %p106 = scmp.eq.s32.totalorder %s18, 0
    %p107 = por %p105, %p106
    %p108 = scmp.ne.s32.totalorder %s96, %s97
    %p109 = scmp.eq.s32.totalorder %s19, 1
    %p110 = por %p108, %p109
    %p112 = scmp.ne.s32.totalorder %s97, %s111
    %p113 = scmp.eq.s32.totalorder %s19, 0
    %p114 = por %p112, %p113
    %s116 = sadd.s32 %s115, 1
    %p119 = scmp.eq.s32.totalorder %s13, 1
    %p120 = scmp.ne.s32.totalorder %s115, %s117
    %p121 = scmp.eq.s32.totalorder %s13, 0
    %p122 = por %p120, %p121
    %p123 = scmp.ne.s32.totalorder %s115, %s117
    %p124 = scmp.eq.s32.totalorder %s18, 1
    %p125 = por %p123, %p124
    %p126 = scmp.ne.s32.totalorder %s117, %s118
    %p127 = scmp.eq.s32.totalorder %s18, 0
    %p128 = por %p126, %p127
    %p129 = scmp.ne.s32.totalorder %s117, %s118
    %p130 = scmp.eq.s32.totalorder %s19, 1
    %p131 = por %p129, %p130
    %p133 = scmp.ne.s32.totalorder %s118, %s132
    %p134 = scmp.eq.s32.totalorder %s19, 0
    %p135 = por %p133, %p134
    %s137 = sadd.s32 %s136, 1
    %p140 = scmp.eq.s32.totalorder %s13, 1
    %p141 = scmp.ne.s32.totalorder %s136, %s138
    %p142 = scmp.eq.s32.totalorder %s13, 0
    %p143 = por %p141, %p142
    %p144 = scmp.ne.s32.totalorder %s136, %s138
    %p145 = scmp.eq.s32.totalorder %s18, 1
    %p146 = por %p144, %p145
    %p147 = scmp.ne.s32.totalorder %s138, %s139
    %p148 = scmp.eq.s32.totalorder %s18, 0
    %p149 = por %p147, %p148
    %p150 = scmp.ne.s32.totalorder %s138, %s139
    %p151 = scmp.eq.s32.totalorder %s19, 1
    %p152 = por %p150, %p151
    %p154 = scmp.ne.s32.totalorder %s139, %s153
    %p155 = scmp.eq.s32.totalorder %s19, 0
    %p156 = por %p154, %p155
    %s158 = sadd.s32 %s157, 1
    %p161 = scmp.eq.s32.totalorder %s13, 1
    %p162 = scmp.ne.s32.totalorder %s157, %s159
    %p163 = scmp.eq.s32.totalorder %s13, 0
    %p164 = por %p162, %p163
    %p165 = scmp.ne.s32.totalorder %s157, %s159
    %p166 = scmp.eq.s32.totalorder %s18, 1
    %p167 = por %p165, %p166
    %p168 = scmp.ne.s32.totalorder %s159, %s160
    %p169 = scmp.eq.s32.totalorder %s18, 0
    %p170 = por %p168, %p169
    %p171 = scmp.ne.s32.totalorder %s159, %s160
    %p172 = scmp.eq.s32.totalorder %s19, 1
    %p173 = por %p171, %p172
    %p175 = scmp.ne.s32.totalorder %s160, %s174
    %p176 = scmp.eq.s32.totalorder %s19, 0
    %p177 = por %p175, %p176
    %s178 = ssub.s32 %s13, %s20
    %p179 = scmp.eq.s32.totalorder %s178, 0
    %s181 = sadd.s32 %s180, 1
    %s182 = scalar_select %p179, %s180, %s181
    %p185 = pneg %p179
    %p186 = scmp.eq.s32.totalorder %s13, 1
    %p187 = por %p185, %p186
    %p188 = scmp.ne.s32.totalorder %s180, %s183
    %p189 = scmp.eq.s32.totalorder %s13, 0
    %p190 = por %p188, %p189
    %p191 = scmp.ne.s32.totalorder %s180, %s183
    %p192 = scmp.eq.s32.totalorder %s18, 1
    %p193 = por %p191, %p192
    %p194 = scmp.ne.s32.totalorder %s183, %s184
    %p195 = scmp.eq.s32.totalorder %s18, 0
    %p196 = por %p194, %p195
    %p197 = scmp.ne.s32.totalorder %s183, %s184
    %p198 = scmp.eq.s32.totalorder %s19, 1
    %p199 = por %p197, %p198
    %p201 = scmp.ne.s32.totalorder %s184, %s200
    %p202 = scmp.eq.s32.totalorder %s19, 0
    %p203 = por %p201, %p202
    %p204 = scmp.le.s32.totalorder 1, %s13
    %p205 = scmp.lt.s32.totalorder %s13, 3
    %p206 = pnand %p204, %p205
    %p207 = pneg %p206
    // Predicated region
    $region9: #{res_sequential.1} parent=5 // pred_check
      _
    $region10: #{res_sequential.1} parent=5 // pred_check_branch
      %209 = sbr.rel (%p206) target = $region12
    $region11: #{res_sequential.1} parent=5 // pred_region
      %s210 = ssub.s32 %s13, 1
      // Predicated region
      $region13: #{res_sequential.1} parent=11 // pred_check
        %p211 = pneg %p86
      $region14: #{res_sequential.1} parent=11 // pred_check_branch
        %213 = sbr.rel (%p211) target = $region16
      $region15: #{res_sequential.1} parent=11 // pred_region
        _
      $region16: #{res_sequential.1} parent=11 // pred_fallthru
        _
      // Predicated region
      $region17: #{res_sequential.1} parent=11 // pred_check
        %p214 = pneg %p107
      $region18: #{res_sequential.1} parent=11 // pred_check_branch
        %216 = sbr.rel (%p214) target = $region20
      $region19: #{res_sequential.1} parent=11 // pred_region
        _
      $region20: #{res_sequential.1} parent=11 // pred_fallthru
        _
      // Predicated region
      $region21: #{res_sequential.1} parent=11 // pred_check
        %p217 = pneg %p128
      $region22: #{res_sequential.1} parent=11 // pred_check_branch
        %219 = sbr.rel (%p217) target = $region24
      $region23: #{res_sequential.1} parent=11 // pred_region
        _
      $region24: #{res_sequential.1} parent=11 // pred_fallthru
        _
      // Predicated region
      $region25: #{res_sequential.1} parent=11 // pred_check
        %p220 = pneg %p149
      $region26: #{res_sequential.1} parent=11 // pred_check_branch
        %222 = sbr.rel (%p220) target = $region28
      $region27: #{res_sequential.1} parent=11 // pred_region
        _
      $region28: #{res_sequential.1} parent=11 // pred_fallthru
        _
      // Predicated region
      $region29: #{res_sequential.1} parent=11 // pred_check
        %p223 = pneg %p170
      $region30: #{res_sequential.1} parent=11 // pred_check_branch
        %225 = sbr.rel (%p223) target = $region32
      $region31: #{res_sequential.1} parent=11 // pred_region
        _
      $region32: #{res_sequential.1} parent=11 // pred_fallthru
        _
    $region12: #{res_sequential.1} parent=5 // pred_fallthru
      _
    %p226 = scmp.lt.s32.totalorder %s13, 2
    // Predicated region
    $region33: #{res_sequential.1} parent=5 // pred_check
      %p227 = pneg %p226
    $region34: #{res_sequential.1} parent=5 // pred_check_branch
      %229 = sbr.rel (%p227) target = $region36
    $region35: #{res_sequential.1} parent=5 // pred_region
      // Predicated region
      $region37: #{res_sequential.1} parent=35 // pred_check
        %p230 = pneg %p33
      $region38: #{res_sequential.1} parent=35 // pred_check_branch
        %232 = sbr.rel (%p230) target = $region40
      $region39: #{res_sequential.1} parent=35 // pred_region
        %p233 = scmp.lt.s32.totalorder %s13, 1
        %s234 = scalar_select %p233, %s13, 1
        %s235 = smul.addr %s234, 3
        %s236 = smul.addr %s235, 4
        %s237 = scalar_lea.vmem %s0, %s236
      $region40: #{res_sequential.1} parent=35 // pred_fallthru
        _
      // Predicated region
      $region41: #{res_sequential.1} parent=35 // pred_check
        %p238 = pneg %p59
      $region42: #{res_sequential.1} parent=35 // pred_check_branch
        %240 = sbr.rel (%p238) target = $region44
      $region43: #{res_sequential.1} parent=35 // pred_region
        %p241 = scmp.lt.s32.totalorder %s13, 1
        %s242 = scalar_select %p241, %s13, 1
        %s243 = smul.addr %s242, 3
        %s244 = smul.addr %s243, 8
        %s245 = scalar_lea.vmem %s1, %s244
      $region44: #{res_sequential.1} parent=35 // pred_fallthru
        _
    $region36: #{res_sequential.1} parent=5 // pred_fallthru
      _
    %p246 = scmp.le.s32.totalorder 1, %s13
    %p247 = scmp.lt.s32.totalorder %s13, 3
    %p248 = pnand %p246, %p247
    %p249 = pneg %p248
    // Predicated region
    $region45: #{res_sequential.1} parent=5 // pred_check
      _
    $region46: #{res_sequential.1} parent=5 // pred_check_branch
      %251 = sbr.rel (%p248) target = $region48
    $region47: #{res_sequential.1} parent=5 // pred_region
      %s252 = ssub.s32 %s13, 1
      %p253 = scmp.lt.s32.totalorder %s18, 1
      %s254 = scalar_select %p253, %s18, 1
      %s255 = smul.addr %s254, 3
      %s256 = smul.addr %s255, 4
      %s257 = scalar_lea.vmem %s0, %s256
      %p258 = pneg %p39
      %p259 = pneg %p36
      %p260 = scmp.lt.s32.totalorder %s18, 1
      %s261 = scalar_select %p260, %s18, 1
      %s262 = smul.addr %s261, 3
      %s263 = smul.addr %s262, 8
      %s264 = scalar_lea.vmem %s1, %s263
      %p265 = pneg %p65
      %p266 = pneg %p62
      %p267 = pneg %p86
      %p268 = pneg %p83
      %p269 = pneg %p107
      %p270 = pneg %p104
      %p271 = pneg %p128
      %p272 = pneg %p125
      %p273 = pneg %p149
      %p274 = pneg %p146
      %p275 = pneg %p170
      %p276 = pneg %p167
      %p277 = pneg %p196
      %p278 = pneg %p193
      %p279 = scmp.lt.s32.totalorder %s18, 1
      %s280 = scalar_select %p279, %s18, 1
      %s281 = smul.addr %s280, 3
      %s282 = smul.addr %s281, 8
      %s283 = scalar_lea.vmem %s7, %s282
      %p284 = scmp.lt.s32.totalorder %s18, 1
      %s285 = scalar_select %p284, %s18, 1
      %s286 = smul.addr %s285, 3
      %s287 = smul.addr %s286, 4
      %s288 = scalar_lea.vmem %s0, %s287
      %p289 = scmp.lt.s32.totalorder %s18, 1
      %s290 = scalar_select %p289, %s18, 1
      %s291 = smul.addr %s290, 3
      %s292 = smul.addr %s291, 8
      %s293 = scalar_lea.vmem %s1, %s292
      %p294 = scmp.lt.s32.totalorder %s18, 1
      %s295 = scalar_select %p294, %s18, 1
      %s296 = smul.addr %s295, 3
      %s297 = smul.addr %s296, 8
      %s298 = scalar_lea.vmem %s7, %s297
      %v300 = vld [vmem:[%s288] sm:$0xf]
      %v301 = vld [vmem:[%s288 + $0x4] sm:$0xf]
      %v302 = vld [vmem:[%s288 + $0x8] sm:$0x1]
      %v303 = vld [vmem:[%s2] sm:$0xf]
      %v304 = vld [vmem:[%s2 + $0x4] sm:$0xf]
      %v305 = vld [vmem:[%s2 + $0x8] sm:$0xf]
      %v306 = vld [vmem:[%s2 + $0xc] sm:$0xf]
      %v307 = vld [vmem:[%s2 + $0x10] sm:$0xf]
      %v308 = vld [vmem:[%s2 + $0x14] sm:$0xf]
      %v309 = vld [vmem:[%s2 + $0x18] sm:$0xf]
      %v310 = vld [vmem:[%s2 + $0x1c] sm:$0xf]
      %v311 = vld [vmem:[%s2 + $0x20] sm:$0xf]
      %v312 = vld [vmem:[%s2 + $0x24] sm:$0xf]
      %v313 = vld [vmem:[%s2 + $0x28] sm:$0xf]
      %v314 = vld [vmem:[%s2 + $0x2c] sm:$0xf]
      %v315 = vld [vmem:[%s2 + $0x30] sm:$0xf]
      %v316 = vld [vmem:[%s2 + $0x34] sm:$0xf]
      %v317 = vld [vmem:[%s2 + $0x38] sm:$0xf]
      %v318 = vld [vmem:[%s2 + $0x3c] sm:$0xf]
      %v319 = vld [vmem:[%s288 + $0x8] sm:$0x3]
      %s320 = scalar_lea.vmem %s2, 64
      %v321 = vld [vmem:[%s320] sm:$0xf]
      %v322 = vld [vmem:[%s320 + $0x4] sm:$0xf]
      %v323 = vld [vmem:[%s320 + $0x8] sm:$0xf]
      %v324 = vld [vmem:[%s320 + $0xc] sm:$0xf]
      %v325 = vld [vmem:[%s320 + $0x10] sm:$0xf]
      %v326 = vld [vmem:[%s320 + $0x14] sm:$0xf]
      %v327 = vld [vmem:[%s320 + $0x18] sm:$0xf]
      %v328 = vld [vmem:[%s320 + $0x1c] sm:$0xf]
      %v329 = vld [vmem:[%s320 + $0x20] sm:$0xf]
      %v330 = vld [vmem:[%s320 + $0x24] sm:$0xf]
      %v331 = vld [vmem:[%s320 + $0x28] sm:$0xf]
      %v332 = vld [vmem:[%s320 + $0x2c] sm:$0xf]
      %v333 = vld [vmem:[%s320 + $0x30] sm:$0xf]
      %v334 = vld [vmem:[%s320 + $0x34] sm:$0xf]
      %v335 = vld [vmem:[%s320 + $0x38] sm:$0xf]
      %v336 = vld [vmem:[%s320 + $0x3c] sm:$0xf]
      %v340 = vunpack.c.l.b16 %v300
      %v341 = vunpack.c.l.b16 %v301
      %v342 = vunpack.c.l.b16 %v319
      %v343 = vpack.c.b16 %v341, %v340
      %v344 = vpack.c.b16 %v342, %v342
      %vm345 = vsmask.f32 7424
      %v347 = vshrl.u32 %v343, 16
      %v349 = vshll.u32 %v343, 16
      %v351 = vrot.slane %v349, 1
      %v352 = vor.u32 %v347, %v351
      %v354 = vshll.u32 %v344, 16
      %v356 = vrot.slane %v354, 1
      %v357 = vsel %vm345, %v352, %v356
      %v358 = vshrl.u32 %v344, 16
      %v360 = vor.u32 %v358, %v356
      %v379 = vunpack.c.l.b16 %v321
      %v380 = vunpack.c.l.b16 %v322
      %v381 = vunpack.c.l.b16 %v323
      %v382 = vunpack.c.l.b16 %v324
      %v383 = vunpack.c.l.b16 %v325
      %v384 = vunpack.c.l.b16 %v326
      %v385 = vunpack.c.l.b16 %v327
      %v386 = vunpack.c.l.b16 %v328
      %v387 = vunpack.c.l.b16 %v329
      %v388 = vunpack.c.l.b16 %v330
      %v389 = vunpack.c.l.b16 %v331
      %v390 = vunpack.c.l.b16 %v332
      %v391 = vunpack.c.l.b16 %v333
      %v392 = vunpack.c.l.b16 %v334
      %v393 = vunpack.c.l.b16 %v335
      %v394 = vunpack.c.l.b16 %v336
      %v395 = vpack.c.b16 %v380, %v379
      %v396 = vpack.c.b16 %v382, %v381
      %v397 = vpack.c.b16 %v384, %v383
      %v398 = vpack.c.b16 %v386, %v385
      %v399 = vpack.c.b16 %v388, %v387
      %v400 = vpack.c.b16 %v390, %v389
      %v401 = vpack.c.b16 %v392, %v391
      %v402 = vpack.c.b16 %v394, %v393
      %411 = vmatprep.subr.bf16.mxu0 0
      %412 = vmatpush1.bf16.msra.mxu0 %v395
      %413 = vmatprep.subr.bf16.mxu0 0
      %414 = vmatpush1.bf16.msra.mxu0 %v396
      %415 = vmatprep.subr.bf16.mxu0 0
      %416 = vmatpush1.bf16.msra.mxu0 %v397
      %417 = vmatprep.subr.bf16.mxu0 0
      %418 = vmatpush1.bf16.msra.mxu0 %v398
      %419 = vmatprep.subr.bf16.mxu0 0
      %420 = vmatpush1.bf16.msra.mxu0 %v399
      %421 = vmatprep.subr.bf16.mxu0 0
      %422 = vmatpush1.bf16.msra.mxu0 %v400
      %423 = vmatprep.subr.bf16.mxu0 0
      %424 = vmatpush1.bf16.msra.mxu0 %v401
      %425 = vmatprep.subr.bf16.mxu0 0
      %426 = vmatpush1.bf16.msra.mxu0 %v402
      %427 = vmatprep.subr.bf16.mxu0 0
      %428 = vmatpush1.bf16.msra.mxu0 0
      %429 = vmatprep.subr.bf16.mxu0 0
      %430 = vmatpush1.bf16.msra.mxu0 0
      %431 = vmatprep.subr.bf16.mxu0 0
      %432 = vmatpush1.bf16.msra.mxu0 0
      %433 = vmatprep.subr.bf16.mxu0 0
      %434 = vmatpush1.bf16.msra.mxu0 0
      %435 = vmatprep.subr.bf16.mxu0 0
      %436 = vmatpush1.bf16.msra.mxu0 0
      %437 = vmatprep.subr.bf16.mxu0 0
      %438 = vmatpush1.bf16.msra.mxu0 0
      %439 = vmatprep.subr.bf16.mxu0 0
      %440 = vmatpush1.bf16.msra.mxu0 0
      %441 = vmatprep.subr.bf16.mxu0 0
      %442 = vmatpush1.bf16.msra.mxu0 0
      %443 = vmatprep.mubr.bf16.mxu0 0
      %444 = vmatmul.mubr.bf16.gmra.mrb[0].mxu0 %v357
      %v445 = vpop.f32.mrb[0].mxu0
      %v446 = vadd.f32 0.0, %v445
      %v447 = vpop.f32.mrb[0].mxu0
      %v448 = vpop.f32.mrb[0].mxu0
      %v449 = vadd.f32 0.0, %v448
      %v450 = vpop.f32.mrb[0].mxu0
      %451 = vmatprep.mubr.bf16.mxu0 0
      %452 = vmatmul.mubr.bf16.gmra.mrb[0].mxu0 %v360
      %v453 = vpop.f32.mrb[0].mxu0
      %v454 = vadd.f32 0.0, %v453
      %v455 = vpop.f32.mrb[0].mxu0
      %v456 = vpop.f32.mrb[0].mxu0
      %v457 = vpop.f32.mrb[0].mxu0
      %458 = vdwg.mxu0
      %v460 = vunpack.c.l.b16 %v302
      %v461 = vpack.c.b16 %v460, %v460
      %v480 = vunpack.c.l.b16 %v303
      %v481 = vunpack.c.l.b16 %v304
      %v482 = vunpack.c.l.b16 %v305
      %v483 = vunpack.c.l.b16 %v306
      %v484 = vunpack.c.l.b16 %v307
      %v485 = vunpack.c.l.b16 %v308
      %v486 = vunpack.c.l.b16 %v309
      %v487 = vunpack.c.l.b16 %v310
      %v488 = vunpack.c.l.b16 %v311
      %v489 = vunpack.c.l.b16 %v312
      %v490 = vunpack.c.l.b16 %v313
      %v491 = vunpack.c.l.b16 %v314
      %v492 = vunpack.c.l.b16 %v315
      %v493 = vunpack.c.l.b16 %v316
      %v494 = vunpack.c.l.b16 %v317
      %v495 = vunpack.c.l.b16 %v318
      %v496 = vpack.c.b16 %v481, %v480
      %v497 = vpack.c.b16 %v483, %v482
      %v498 = vpack.c.b16 %v485, %v484
      %v499 = vpack.c.b16 %v487, %v486
      %v500 = vpack.c.b16 %v489, %v488
      %v501 = vpack.c.b16 %v491, %v490
      %v502 = vpack.c.b16 %v493, %v492
      %v503 = vpack.c.b16 %v495, %v494
      %512 = vmatprep.subr.bf16.mxu0 0
      %513 = vmatpush1.bf16.msra.mxu0 %v496
      %514 = vmatprep.subr.bf16.mxu0 0
      %515 = vmatpush1.bf16.msra.mxu0 %v497
      %516 = vmatprep.subr.bf16.mxu0 0
      %517 = vmatpush1.bf16.msra.mxu0 %v498
      %518 = vmatprep.subr.bf16.mxu0 0
      %519 = vmatpush1.bf16.msra.mxu0 %v499
      %520 = vmatprep.subr.bf16.mxu0 0
      %521 = vmatpush1.bf16.msra.mxu0 %v500
      %522 = vmatprep.subr.bf16.mxu0 0
      %523 = vmatpush1.bf16.msra.mxu0 %v501
      %524 = vmatprep.subr.bf16.mxu0 0
      %525 = vmatpush1.bf16.msra.mxu0 %v502
      %526 = vmatprep.subr.bf16.mxu0 0
      %527 = vmatpush1.bf16.msra.mxu0 %v503
      %528 = vmatprep.subr.bf16.mxu0 0
      %529 = vmatpush1.bf16.msra.mxu0 0
      %530 = vmatprep.subr.bf16.mxu0 0
      %531 = vmatpush1.bf16.msra.mxu0 0
      %532 = vmatprep.subr.bf16.mxu0 0
      %533 = vmatpush1.bf16.msra.mxu0 0
      %534 = vmatprep.subr.bf16.mxu0 0
      %535 = vmatpush1.bf16.msra.mxu0 0
      %536 = vmatprep.subr.bf16.mxu0 0
      %537 = vmatpush1.bf16.msra.mxu0 0
      %538 = vmatprep.subr.bf16.mxu0 0
      %539 = vmatpush1.bf16.msra.mxu0 0
      %540 = vmatprep.subr.bf16.mxu0 0
      %541 = vmatpush1.bf16.msra.mxu0 0
      %542 = vmatprep.subr.bf16.mxu0 0
      %543 = vmatpush1.bf16.msra.mxu0 0
      %544 = vmatprep.mubr.bf16.mxu0 0
      %545 = vmatmul.mubr.bf16.gmra.mrb[0].mxu0 %v343
      %v546 = vpop.f32.mrb[0].mxu0
      %v547 = vadd.f32 %v446, %v546
      %v548 = vpop.f32.mrb[0].mxu0
      %v549 = vpop.f32.mrb[0].mxu0
      %v550 = vadd.f32 %v449, %v549
      %v551 = vpop.f32.mrb[0].mxu0
      %552 = vmatprep.mubr.bf16.mxu0 0
      %553 = vmatmul.mubr.bf16.gmra.mrb[0].mxu0 %v461
      %v554 = vpop.f32.mrb[0].mxu0
      %v555 = vadd.f32 %v454, %v554
      %v556 = vpop.f32.mrb[0].mxu0
      %v557 = vpop.f32.mrb[0].mxu0
      %v558 = vpop.f32.mrb[0].mxu0
      %559 = vdwg.mxu0
      %v560 = vld [vmem:[%s288] sm:$0xe]
      %s561 = scalar_lea.vmem %s2, 128
      %v562 = vld [vmem:[%s561] sm:$0xf]
      %v563 = vld [vmem:[%s561 + $0x4] sm:$0xf]
      %v564 = vld [vmem:[%s561 + $0x8] sm:$0xf]
      %v565 = vld [vmem:[%s561 + $0xc] sm:$0xf]
      %v566 = vld [vmem:[%s561 + $0x10] sm:$0xf]
      %v567 = vld [vmem:[%s561 + $0x14] sm:$0xf]
      %v568 = vld [vmem:[%s561 + $0x18] sm:$0xf]
      %v569 = vld [vmem:[%s561 + $0x1c] sm:$0xf]
      %v570 = vld [vmem:[%s561 + $0x20] sm:$0xf]
      %v571 = vld [vmem:[%s561 + $0x24] sm:$0xf]
      %v572 = vld [vmem:[%s561 + $0x28] sm:$0xf]
      %v573 = vld [vmem:[%s561 + $0x2c] sm:$0xf]
      %v574 = vld [vmem:[%s561 + $0x30] sm:$0xf]
      %v575 = vld [vmem:[%s561 + $0x34] sm:$0xf]
      %v576 = vld [vmem:[%s561 + $0x38] sm:$0xf]
      %v577 = vld [vmem:[%s561 + $0x3c] sm:$0xf]
      %v579 = vunpack.c.l.b16 %v560
      %v580 = vpack.c.b16 %v341, %v579
      %vm581 = vcmask 1046528
      %v582 = vrot.slane %v580, 1
      %v583 = vrot.slane %v344, 1
      %v584 = vsel %vm581, %v582, %v583
      %v603 = vunpack.c.l.b16 %v562
      %v604 = vunpack.c.l.b16 %v563
      %v605 = vunpack.c.l.b16 %v564
      %v606 = vunpack.c.l.b16 %v565
      %v607 = vunpack.c.l.b16 %v566
      %v608 = vunpack.c.l.b16 %v567
      %v609 = vunpack.c.l.b16 %v568
      %v610 = vunpack.c.l.b16 %v569
      %v611 = vunpack.c.l.b16 %v570
      %v612 = vunpack.c.l.b16 %v571
      %v613 = vunpack.c.l.b16 %v572
      %v614 = vunpack.c.l.b16 %v573
      %v615 = vunpack.c.l.b16 %v574
      %v616 = vunpack.c.l.b16 %v575
      %v617 = vunpack.c.l.b16 %v576
      %v618 = vunpack.c.l.b16 %v577
      %v619 = vpack.c.b16 %v604, %v603
      %v620 = vpack.c.b16 %v606, %v605
      %v621 = vpack.c.b16 %v608, %v607
      %v622 = vpack.c.b16 %v610, %v609
      %v623 = vpack.c.b16 %v612, %v611
      %v624 = vpack.c.b16 %v614, %v613
      %v625 = vpack.c.b16 %v616, %v615
      %v626 = vpack.c.b16 %v618, %v617
      %635 = vmatprep.subr.bf16.mxu0 0
      %636 = vmatpush1.bf16.msra.mxu0 %v619
      %637 = vmatprep.subr.bf16.mxu0 0
      %638 = vmatpush1.bf16.msra.mxu0 %v620
      %639 = vmatprep.subr.bf16.mxu0 0
      %640 = vmatpush1.bf16.msra.mxu0 %v621
      %641 = vmatprep.subr.bf16.mxu0 0
      %642 = vmatpush1.bf16.msra.mxu0 %v622
      %643 = vmatprep.subr.bf16.mxu0 0
      %644 = vmatpush1.bf16.msra.mxu0 %v623
      %645 = vmatprep.subr.bf16.mxu0 0
      %646 = vmatpush1.bf16.msra.mxu0 %v624
      %647 = vmatprep.subr.bf16.mxu0 0
      %648 = vmatpush1.bf16.msra.mxu0 %v625
      %649 = vmatprep.subr.bf16.mxu0 0
      %650 = vmatpush1.bf16.msra.mxu0 %v626
      %651 = vmatprep.subr.bf16.mxu0 0
      %652 = vmatpush1.bf16.msra.mxu0 0
      %653 = vmatprep.subr.bf16.mxu0 0
      %654 = vmatpush1.bf16.msra.mxu0 0
      %655 = vmatprep.subr.bf16.mxu0 0
      %656 = vmatpush1.bf16.msra.mxu0 0
      %657 = vmatprep.subr.bf16.mxu0 0
      %658 = vmatpush1.bf16.msra.mxu0 0
      %659 = vmatprep.subr.bf16.mxu0 0
      %660 = vmatpush1.bf16.msra.mxu0 0
      %661 = vmatprep.subr.bf16.mxu0 0
      %662 = vmatpush1.bf16.msra.mxu0 0
      %663 = vmatprep.subr.bf16.mxu0 0
      %664 = vmatpush1.bf16.msra.mxu0 0
      %665 = vmatprep.subr.bf16.mxu0 0
      %666 = vmatpush1.bf16.msra.mxu0 0
      %667 = vmatprep.mubr.bf16.mxu0 0
      %668 = vmatmul.mubr.bf16.gmra.mrb[0].mxu0 %v584
      %v669 = vpop.f32.mrb[0].mxu0
      %v670 = vadd.f32 0.0, %v669
      %v671 = vpop.f32.mrb[0].mxu0
      %v672 = vpop.f32.mrb[0].mxu0
      %v673 = vadd.f32 0.0, %v672
      %v674 = vpop.f32.mrb[0].mxu0
      %675 = vmatprep.mubr.bf16.mxu0 0
      %676 = vmatmul.mubr.bf16.gmra.mrb[0].mxu0 %v583
      %v677 = vpop.f32.mrb[0].mxu0
      %v678 = vadd.f32 0.0, %v677
      %v679 = vpop.f32.mrb[0].mxu0
      %v680 = vpop.f32.mrb[0].mxu0
      %v681 = vpop.f32.mrb[0].mxu0
      %682 = vdwg.mxu0
      %v683 = vadd.f32 %v547, %v670
      %v684 = vadd.f32 %v550, %v673
      %v685 = vadd.f32 %v555, %v678
      %v686 = vld [vmem:[%s3] sm:$0x1]
      %v688 = vlaneseq
      %v689 = vshrl.u32 %v688, 7
      %v690 = vsub.s32 0, %v689
      %v691 = vrot.slane %v686, %v690
      %v693 = vadd.f32 %v683, %v691
      %v694 = vadd.f32 %v684, %v691
      %v695 = vadd.f32 %v685, %v691
      %v696 = vmax.f32 %v693, 0.0
      %v697 = vmax.f32 %v694, 0.0
      %v698 = vmax.f32 %v695, 0.0
      %v699 = vld [vmem:[%s6] sm:$0xff]
      %v700 = vld [vmem:[%s6 + $0x8] sm:$0xff]
      %v701 = vld [vmem:[%s6 + $0x10] sm:$0x3]
      %703 = vset.pattern.permute.xlu0 0
      %704 = vperm.xlu0 %703, %v699
      %v705 = vpop.permute.xlu0 %704
      %708 = vset.pattern.permute.xlu0 0
      %709 = vperm.xlu0 %708, %v700
      %v710 = vpop.permute.xlu0 %709
      %713 = vset.pattern.permute.xlu0 0
      %714 = vperm.xlu0 %713, %v701
      %v715 = vpop.permute.xlu0 %714
      %v717 = vmul.f32 %v696, %v705
      %v718 = vmul.f32 %v697, %v710
      %v719 = vmul.f32 %v698, %v715
      %v720 = vpack.c.bf16 %v718, %v717
      %v721 = vpack.c.bf16 %v719, %v719
      %v724 = vunpack.c.l.b16 %v720
      %v725 = vunpack.c.h.b16 %v720
      %v726 = vunpack.c.l.b16 %v721
      %v727 = vpack.c.b16 %v724, %v724
      %v728 = vpack.c.b16 %v725, %v725
      %v729 = vpack.c.b16 %v726, %v726
      %733 = vst [vmem:[#allocation2] sm:$0xf] %v727
      %734 = vst [vmem:[#allocation2 + $0x4] sm:$0xf] %v728
      %735 = vst [vmem:[#allocation2 + $0x8] sm:$0x1] %v729
      %736 = vst [vmem:[#allocation2 + $0x8] sm:$0xe] 0
      %v737 = vld [vmem:[#allocation2] sm:$0xf]
      %v738 = vld [vmem:[#allocation2 + $0x4] sm:$0xf]
      %v739 = vld [vmem:[#allocation2 + $0x8] sm:$0x1]
      %v740 = vld [vmem:[%s4] sm:$0xf]
      %v741 = vld [vmem:[%s4 + $0x4] sm:$0xf]
      %v742 = vld [vmem:[%s4 + $0x8] sm:$0xf]
      %v743 = vld [vmem:[%s4 + $0xc] sm:$0xf]
      %v744 = vld [vmem:[%s4 + $0x10] sm:$0xf]
      %v745 = vld [vmem:[%s4 + $0x14] sm:$0xf]
      %v746 = vld [vmem:[%s4 + $0x18] sm:$0xf]
      %v747 = vld [vmem:[%s4 + $0x1c] sm:$0xf]
      %v748 = vld [vmem:[%s4 + $0x20] sm:$0xf]
      %v749 = vld [vmem:[%s4 + $0x24] sm:$0xf]
      %v750 = vld [vmem:[%s4 + $0x28] sm:$0xf]
      %v751 = vld [vmem:[%s4 + $0x2c] sm:$0xf]
      %v752 = vld [vmem:[%s4 + $0x30] sm:$0xf]
      %v753 = vld [vmem:[%s4 + $0x34] sm:$0xf]
      %v754 = vld [vmem:[%s4 + $0x38] sm:$0xf]
      %v755 = vld [vmem:[%s4 + $0x3c] sm:$0xf]
      %v756 = vld [vmem:[#allocation2 + $0x8] sm:$0x3]
      %s757 = scalar_lea.vmem %s4, 64
      %v758 = vld [vmem:[%s757] sm:$0xf]
      %v759 = vld [vmem:[%s757 + $0x4] sm:$0xf]
      %v760 = vld [vmem:[%s757 + $0x8] sm:$0xf]
      %v761 = vld [vmem:[%s757 + $0xc] sm:$0xf]
      %v762 = vld [vmem:[%s757 + $0x10] sm:$0xf]
      %v763 = vld [vmem:[%s757 + $0x14] sm:$0xf]
      %v764 = vld [vmem:[%s757 + $0x18] sm:$0xf]
      %v765 = vld [vmem:[%s757 + $0x1c] sm:$0xf]
      %v766 = vld [vmem:[%s757 + $0x20] sm:$0xf]
      %v767 = vld [vmem:[%s757 + $0x24] sm:$0xf]
      %v768 = vld [vmem:[%s757 + $0x28] sm:$0xf]
      %v769 = vld [vmem:[%s757 + $0x2c] sm:$0xf]
      %v770 = vld [vmem:[%s757 + $0x30] sm:$0xf]
      %v771 = vld [vmem:[%s757 + $0x34] sm:$0xf]
      %v772 = vld [vmem:[%s757 + $0x38] sm:$0xf]
      %v773 = vld [vmem:[%s757 + $0x3c] sm:$0xf]
      %v777 = vunpack.c.l.b16 %v737
      %v778 = vunpack.c.l.b16 %v738
      %v779 = vunpack.c.l.b16 %v756
      %v780 = vpack.c.b16 %v778, %v777
      %v781 = vpack.c.b16 %v779, %v779
      %v783 = vshrl.u32 %v780, 16
      %v785 = vshll.u32 %v780, 16
      %v787 = vrot.slane %v785, 1
      %v788 = vor.u32 %v783, %v787
      %v790 = vshll.u32 %v781, 16
      %v792 = vrot.slane %v790, 1
      %v793 = vsel %vm345, %v788, %v792
      %v794 = vshrl.u32 %v781, 16
      %v796 = vor.u32 %v794, %v792
      %v815 = vunpack.c.l.b16 %v758
      %v816 = vunpack.c.l.b16 %v759
      %v817 = vunpack.c.l.b16 %v760
      %v818 = vunpack.c.l.b16 %v761
      %v819 = vunpack.c.l.b16 %v762
      %v820 = vunpack.c.l.b16 %v763
      %v821 = vunpack.c.l.b16 %v764
      %v822 = vunpack.c.l.b16 %v765
      %v823 = vunpack.c.l.b16 %v766
      %v824 = vunpack.c.l.b16 %v767
      %v825 = vunpack.c.l.b16 %v768
      %v826 = vunpack.c.l.b16 %v769
      %v827 = vunpack.c.l.b16 %v770
      %v828 = vunpack.c.l.b16 %v771
      %v829 = vunpack.c.l.b16 %v772
      %v830 = vunpack.c.l.b16 %v773
      %v831 = vpack.c.b16 %v816, %v815
      %v832 = vpack.c.b16 %v818, %v817
      %v833 = vpack.c.b16 %v820, %v819
      %v834 = vpack.c.b16 %v822, %v821
      %v835 = vpack.c.b16 %v824, %v823
      %v836 = vpack.c.b16 %v826, %v825
      %v837 = vpack.c.b16 %v828, %v827
      %v838 = vpack.c.b16 %v830, %v829
      %847 = vmatprep.subr.bf16.mxu0 0
      %848 = vmatpush1.bf16.msra.mxu0 %v831
      %849 = vmatprep.subr.bf16.mxu0 0
      %850 = vmatpush1.bf16.msra.mxu0 %v832
      %851 = vmatprep.subr.bf16.mxu0 0
      %852 = vmatpush1.bf16.msra.mxu0 %v833
      %853 = vmatprep.subr.bf16.mxu0 0
      %854 = vmatpush1.bf16.msra.mxu0 %v834
      %855 = vmatprep.subr.bf16.mxu0 0
      %856 = vmatpush1.bf16.msra.mxu0 %v835
      %857 = vmatprep.subr.bf16.mxu0 0
      %858 = vmatpush1.bf16.msra.mxu0 %v836
      %859 = vmatprep.subr.bf16.mxu0 0
      %860 = vmatpush1.bf16.msra.mxu0 %v837
      %861 = vmatprep.subr.bf16.mxu0 0
      %862 = vmatpush1.bf16.msra.mxu0 %v838
      %863 = vmatprep.subr.bf16.mxu0 0
      %864 = vmatpush1.bf16.msra.mxu0 0
      %865 = vmatprep.subr.bf16.mxu0 0
      %866 = vmatpush1.bf16.msra.mxu0 0
      %867 = vmatprep.subr.bf16.mxu0 0
      %868 = vmatpush1.bf16.msra.mxu0 0
      %869 = vmatprep.subr.bf16.mxu0 0
      %870 = vmatpush1.bf16.msra.mxu0 0
      %871 = vmatprep.subr.bf16.mxu0 0
      %872 = vmatpush1.bf16.msra.mxu0 0
      %873 = vmatprep.subr.bf16.mxu0 0
      %874 = vmatpush1.bf16.msra.mxu0 0
      %875 = vmatprep.subr.bf16.mxu0 0
      %876 = vmatpush1.bf16.msra.mxu0 0
      %877 = vmatprep.subr.bf16.mxu0 0
      %878 = vmatpush1.bf16.msra.mxu0 0
      %879 = vmatprep.mubr.bf16.mxu0 0
      %880 = vmatmul.mubr.bf16.gmra.mrb[0].mxu0 %v793
      %v881 = vpop.f32.mrb[0].mxu0
      %v882 = vadd.f32 0.0, %v881
      %v883 = vpop.f32.mrb[0].mxu0
      %v884 = vpop.f32.mrb[0].mxu0
      %v885 = vadd.f32 0.0, %v884
      %v886 = vpop.f32.mrb[0].mxu0
      %887 = vmatprep.mubr.bf16.mxu0 0
      %888 = vmatmul.mubr.bf16.gmra.mrb[0].mxu0 %v796
      %v889 = vpop.f32.mrb[0].mxu0
      %v890 = vadd.f32 0.0, %v889
      %v891 = vpop.f32.mrb[0].mxu0
      %v892 = vpop.f32.mrb[0].mxu0
      %v893 = vpop.f32.mrb[0].mxu0
      %894 = vdwg.mxu0
      %v896 = vunpack.c.l.b16 %v739
      %v897 = vpack.c.b16 %v896, %v896
      %v916 = vunpack.c.l.b16 %v740
      %v917 = vunpack.c.l.b16 %v741
      %v918 = vunpack.c.l.b16 %v742
      %v919 = vunpack.c.l.b16 %v743
      %v920 = vunpack.c.l.b16 %v744
      %v921 = vunpack.c.l.b16 %v745
      %v922 = vunpack.c.l.b16 %v746
      %v923 = vunpack.c.l.b16 %v747
      %v924 = vunpack.c.l.b16 %v748
      %v925 = vunpack.c.l.b16 %v749
      %v926 = vunpack.c.l.b16 %v750
      %v927 = vunpack.c.l.b16 %v751
      %v928 = vunpack.c.l.b16 %v752
      %v929 = vunpack.c.l.b16 %v753
      %v930 = vunpack.c.l.b16 %v754
      %v931 = vunpack.c.l.b16 %v755
      %v932 = vpack.c.b16 %v917, %v916
      %v933 = vpack.c.b16 %v919, %v918
      %v934 = vpack.c.b16 %v921, %v920
      %v935 = vpack.c.b16 %v923, %v922
      %v936 = vpack.c.b16 %v925, %v924
      %v937 = vpack.c.b16 %v927, %v926
      %v938 = vpack.c.b16 %v929, %v928
      %v939 = vpack.c.b16 %v931, %v930
      %948 = vmatprep.subr.bf16.mxu0 0
      %949 = vmatpush1.bf16.msra.mxu0 %v932
      %950 = vmatprep.subr.bf16.mxu0 0
      %951 = vmatpush1.bf16.msra.mxu0 %v933
      %952 = vmatprep.subr.bf16.mxu0 0
      %953 = vmatpush1.bf16.msra.mxu0 %v934
      %954 = vmatprep.subr.bf16.mxu0 0
      %955 = vmatpush1.bf16.msra.mxu0 %v935
      %956 = vmatprep.subr.bf16.mxu0 0
      %957 = vmatpush1.bf16.msra.mxu0 %v936
      %958 = vmatprep.subr.bf16.mxu0 0
      %959 = vmatpush1.bf16.msra.mxu0 %v937
      %960 = vmatprep.subr.bf16.mxu0 0
      %961 = vmatpush1.bf16.msra.mxu0 %v938
      %962 = vmatprep.subr.bf16.mxu0 0
      %963 = vmatpush1.bf16.msra.mxu0 %v939
      %964 = vmatprep.subr.bf16.mxu0 0
      %965 = vmatpush1.bf16.msra.mxu0 0
      %966 = vmatprep.subr.bf16.mxu0 0
      %967 = vmatpush1.bf16.msra.mxu0 0
      %968 = vmatprep.subr.bf16.mxu0 0
      %969 = vmatpush1.bf16.msra.mxu0 0
      %970 = vmatprep.subr.bf16.mxu0 0
      %971 = vmatpush1.bf16.msra.mxu0 0
      %972 = vmatprep.subr.bf16.mxu0 0
      %973 = vmatpush1.bf16.msra.mxu0 0
      %974 = vmatprep.subr.bf16.mxu0 0
      %975 = vmatpush1.bf16.msra.mxu0 0
      %976 = vmatprep.subr.bf16.mxu0 0
      %977 = vmatpush1.bf16.msra.mxu0 0
      %978 = vmatprep.subr.bf16.mxu0 0
      %979 = vmatpush1.bf16.msra.mxu0 0
      %980 = vmatprep.mubr.bf16.mxu0 0
      %981 = vmatmul.mubr.bf16.gmra.mrb[0].mxu0 %v780
      %v982 = vpop.f32.mrb[0].mxu0
      %v983 = vadd.f32 %v882, %v982
      %v984 = vpop.f32.mrb[0].mxu0
      %v985 = vpop.f32.mrb[0].mxu0
      %v986 = vadd.f32 %v885, %v985
      %v987 = vpop.f32.mrb[0].mxu0
      %988 = vmatprep.mubr.bf16.mxu0 0
      %989 = vmatmul.mubr.bf16.gmra.mrb[0].mxu0 %v897
      %v990 = vpop.f32.mrb[0].mxu0
      %v991 = vadd.f32 %v890, %v990
      %v992 = vpop.f32.mrb[0].mxu0
      %v993 = vpop.f32.mrb[0].mxu0
      %v994 = vpop.f32.mrb[0].mxu0
      %995 = vdwg.mxu0
      %v996 = vld [vmem:[#allocation2] sm:$0xe]
      %s997 = scalar_lea.vmem %s4, 128
      %v998 = vld [vmem:[%s997] sm:$0xf]
      %v999 = vld [vmem:[%s997 + $0x4] sm:$0xf]
      %v1000 = vld [vmem:[%s997 + $0x8] sm:$0xf]
      %v1001 = vld [vmem:[%s997 + $0xc] sm:$0xf]
      %v1002 = vld [vmem:[%s997 + $0x10] sm:$0xf]
      %v1003 = vld [vmem:[%s997 + $0x14] sm:$0xf]
      %v1004 = vld [vmem:[%s997 + $0x18] sm:$0xf]
      %v1005 = vld [vmem:[%s997 + $0x1c] sm:$0xf]
      %v1006 = vld [vmem:[%s997 + $0x20] sm:$0xf]
      %v1007 = vld [vmem:[%s997 + $0x24] sm:$0xf]
      %v1008 = vld [vmem:[%s997 + $0x28] sm:$0xf]
      %v1009 = vld [vmem:[%s997 + $0x2c] sm:$0xf]
      %v1010 = vld [vmem:[%s997 + $0x30] sm:$0xf]
      %v1011 = vld [vmem:[%s997 + $0x34] sm:$0xf]
      %v1012 = vld [vmem:[%s997 + $0x38] sm:$0xf]
      %v1013 = vld [vmem:[%s997 + $0x3c] sm:$0xf]
      %v1015 = vunpack.c.l.b16 %v996
      %v1016 = vpack.c.b16 %v778, %v1015
      %v1017 = vrot.slane %v1016, 1
      %v1018 = vrot.slane %v781, 1
      %v1019 = vsel %vm581, %v1017, %v1018
      %v1038 = vunpack.c.l.b16 %v998
      %v1039 = vunpack.c.l.b16 %v999
      %v1040 = vunpack.c.l.b16 %v1000
      %v1041 = vunpack.c.l.b16 %v1001
      %v1042 = vunpack.c.l.b16 %v1002
      %v1043 = vunpack.c.l.b16 %v1003
      %v1044 = vunpack.c.l.b16 %v1004
      %v1045 = vunpack.c.l.b16 %v1005
      %v1046 = vunpack.c.l.b16 %v1006
      %v1047 = vunpack.c.l.b16 %v1007
      %v1048 = vunpack.c.l.b16 %v1008
      %v1049 = vunpack.c.l.b16 %v1009
      %v1050 = vunpack.c.l.b16 %v1010
      %v1051 = vunpack.c.l.b16 %v1011
      %v1052 = vunpack.c.l.b16 %v1012
      %v1053 = vunpack.c.l.b16 %v1013
      %v1054 = vpack.c.b16 %v1039, %v1038
      %v1055 = vpack.c.b16 %v1041, %v1040
      %v1056 = vpack.c.b16 %v1043, %v1042
      %v1057 = vpack.c.b16 %v1045, %v1044
      %v1058 = vpack.c.b16 %v1047, %v1046
      %v1059 = vpack.c.b16 %v1049, %v1048
      %v1060 = vpack.c.b16 %v1051, %v1050
      %v1061 = vpack.c.b16 %v1053, %v1052
      %1070 = vmatprep.subr.bf16.mxu0 0
      %1071 = vmatpush1.bf16.msra.mxu0 %v1054
      %1072 = vmatprep.subr.bf16.mxu0 0
      %1073 = vmatpush1.bf16.msra.mxu0 %v1055
      %1074 = vmatprep.subr.bf16.mxu0 0
      %1075 = vmatpush1.bf16.msra.mxu0 %v1056
      %1076 = vmatprep.subr.bf16.mxu0 0
      %1077 = vmatpush1.bf16.msra.mxu0 %v1057
      %1078 = vmatprep.subr.bf16.mxu0 0
      %1079 = vmatpush1.bf16.msra.mxu0 %v1058
      %1080 = vmatprep.subr.bf16.mxu0 0
      %1081 = vmatpush1.bf16.msra.mxu0 %v1059
      %1082 = vmatprep.subr.bf16.mxu0 0
      %1083 = vmatpush1.bf16.msra.mxu0 %v1060
      %1084 = vmatprep.subr.bf16.mxu0 0
      %1085 = vmatpush1.bf16.msra.mxu0 %v1061
      %1086 = vmatprep.subr.bf16.mxu0 0
      %1087 = vmatpush1.bf16.msra.mxu0 0
      %1088 = vmatprep.subr.bf16.mxu0 0
      %1089 = vmatpush1.bf16.msra.mxu0 0
      %1090 = vmatprep.subr.bf16.mxu0 0
      %1091 = vmatpush1.bf16.msra.mxu0 0
      %1092 = vmatprep.subr.bf16.mxu0 0
      %1093 = vmatpush1.bf16.msra.mxu0 0
      %1094 = vmatprep.subr.bf16.mxu0 0
      %1095 = vmatpush1.bf16.msra.mxu0 0
      %1096 = vmatprep.subr.bf16.mxu0 0
      %1097 = vmatpush1.bf16.msra.mxu0 0
      %1098 = vmatprep.subr.bf16.mxu0 0
      %1099 = vmatpush1.bf16.msra.mxu0 0
      %1100 = vmatprep.subr.bf16.mxu0 0
      %1101 = vmatpush1.bf16.msra.mxu0 0
      %1102 = vmatprep.mubr.bf16.mxu0 0
      %1103 = vmatmul.mubr.bf16.gmra.mrb[0].mxu0 %v1019
      %v1104 = vpop.f32.mrb[0].mxu0
      %v1105 = vadd.f32 0.0, %v1104
      %v1106 = vpop.f32.mrb[0].mxu0
      %v1107 = vpop.f32.mrb[0].mxu0
      %v1108 = vadd.f32 0.0, %v1107
      %v1109 = vpop.f32.mrb[0].mxu0
      %1110 = vmatprep.mubr.bf16.mxu0 0
      %1111 = vmatmul.mubr.bf16.gmra.mrb[0].mxu0 %v1018
      %v1112 = vpop.f32.mrb[0].mxu0
      %v1113 = vadd.f32 0.0, %v1112
      %v1114 = vpop.f32.mrb[0].mxu0
      %v1115 = vpop.f32.mrb[0].mxu0
      %v1116 = vpop.f32.mrb[0].mxu0
      %1117 = vdwg.mxu0
      %v1118 = vadd.f32 %v983, %v1105
      %v1119 = vadd.f32 %v986, %v1108
      %v1120 = vadd.f32 %v991, %v1113
      %v1121 = vld [vmem:[%s5] sm:$0x1]
      %v1123 = vlaneseq
      %v1124 = vshrl.u32 %v1123, 7
      %v1125 = vsub.s32 0, %v1124
      %v1126 = vrot.slane %v1121, %v1125
      %v1128 = vadd.f32 %v1118, %v1126
      %v1129 = vadd.f32 %v1119, %v1126
      %v1130 = vadd.f32 %v1120, %v1126
      %v1131 = vld [vmem:[%s293] sm:$0xff]
      %v1132 = vld [vmem:[%s293 + $0x8] sm:$0xff]
      %v1133 = vld [vmem:[%s293 + $0x10] sm:$0x3]
      %v1134 = vadd.f32 %v1128, %v1131
      %v1135 = vadd.f32 %v1129, %v1132
      %v1136 = vadd.f32 %v1130, %v1133
      %1137 = vst [vmem:[%s298] sm:$0xff] %v1134
      %1138 = vst [vmem:[%s298 + $0x8] sm:$0xff] %v1135
      %1139 = vst [vmem:[%s298 + $0x10] sm:$0x3] %v1136
      %p1140 = scmp.lt.s32.totalorder %s18, 1
      %s1141 = scalar_select %p1140, %s18, 1
      %s1142 = smul.addr %s1141, 3
      %s1143 = smul.addr %s1142, 8
      %s1144 = scalar_lea.vmem %s7, %s1143
      // Predicated region
      $region49: #{res_sequential.1} parent=47 // pred_check
        %p1145 = pneg %p193
      $region50: #{res_sequential.1} parent=47 // pred_check_branch
        %1147 = sbr.rel (%p1145) target = $region52
      $region51: #{res_sequential.1} parent=47 // pred_region
        _
      $region52: #{res_sequential.1} parent=47 // pred_fallthru
        _
    $region48: #{res_sequential.1} parent=5 // pred_fallthru
      _
    %p1148 = scmp.le.s32.totalorder 2, %s13
    // Predicated region
    $region53: #{res_sequential.1} parent=5 // pred_check
      %p1149 = pneg %p1148
    $region54: #{res_sequential.1} parent=5 // pred_check_branch
      %1151 = sbr.rel (%p1149) target = $region56
    $region55: #{res_sequential.1} parent=5 // pred_region
      %s1152 = ssub.s32 %s13, 2
      // Predicated region
      $region57: #{res_sequential.1} parent=55 // pred_check
        %p1153 = pneg %p199
      $region58: #{res_sequential.1} parent=55 // pred_check_branch
        %1155 = sbr.rel (%p1153) target = $region60
      $region59: #{res_sequential.1} parent=55 // pred_region
        %p1156 = scmp.lt.s32.totalorder %s19, 1
        %s1157 = scalar_select %p1156, %s19, 1
        %s1158 = smul.addr %s1157, 3
        %s1159 = smul.addr %s1158, 8
        %s1160 = scalar_lea.vmem %s7, %s1159
      $region60: #{res_sequential.1} parent=55 // pred_fallthru
        _
    $region56: #{res_sequential.1} parent=5 // pred_fallthru
      _
  $region6: #{res_sequential.1} parent=0 // loop_footer
    %s17 = sadd.s32 1, %s13
  $region7: #{res_sequential.1} parent=0 // loop_footer_branch
    %12 = sbr.rel target = $region3
  $region8: #{res_sequential.1} parent=0 // loop_exit
    _

</llo_original>
